<compile_context>
chip_gen: v6e
topology: v6e:2x2x1
jax: 0.10.0
libtpu: 0.0.40
codegen_flags: <defaults>
</compile_context>

<pallas_src>
import jax
import jax.numpy as jnp
from jax import lax
from jax.experimental import pallas as pl
from jax.experimental.pallas import tpu as pltpu  # noqa: F401  (kept for TPU-specific tuning)


def attn_head_kernel(seq_ref, bias_ref, w12t_ref, out_ref):
    seq = seq_ref[...]          # (N, D)  f32
    bias = bias_ref[...]        # (N, N)  f32
    w12t = w12t_ref[...]        # (D, 2F) f32, [w1.T | w2.T]

    two_f = w12t.shape[1]
    f = two_f // 2

    # Fused projection: one MXU matmul + one lane-dense tanh over (N, 2F).
    fused = jnp.tanh(jnp.dot(seq, w12t, preferred_element_type=jnp.float32))   # (N, 2F)

    seq_fts = fused[:, :f]                                   # (N, F) key/value half
    inv_sqrt_f = 1.0 / jnp.sqrt(jnp.float32(f))
    seq_fts2 = fused[:, f:] * inv_sqrt_f                     # (N, F) query half, pre-scaled

    # logits = seq_fts2_scaled @ seq_fts.T  (contract over the feature dim)
    logits = lax.dot_general(
        seq_fts2, seq_fts,
        dimension_numbers=(((1,), (1,)), ((), ())),
        preferred_element_type=jnp.float32)                  # (N, N)

    # tanh bounds |logits| <= sqrt(F) (~8 here), so un-shifted exp is safe.
    unnorm = jnp.exp(logits) * bias                          # (N, N)

    # PyTorch semantics: coefs[i, j] = unnorm[i, j] / rowsum[j].
    # Fold 1/rowsum into the value rows: coefs @ V == unnorm @ (V * inv[:, None]).
    row_sums = jnp.sum(unnorm, axis=-1, keepdims=True)       # (N, 1)
    inv_rows = pl.reciprocal(row_sums, approx=False)         # N reciprocals, not N*N divides
    v = fused * inv_rows                                     # (N, 2F), lane-dense scale

    x = jnp.dot(unnorm, v, preferred_element_type=jnp.float32)    # (N, 2F)
    ret = jnp.dot(bias, x, preferred_element_type=jnp.float32)    # (N, 2F)

    out_ref[...] = ret.astype(out_ref.dtype)                 # full-width unmasked store


def attn_head_forward(seq, bias_mat, w1, w2):
    """seq: (N, D), bias_mat: (N, N), w1/w2: (F, D) -> (N, F)."""
    N, D = seq.shape
    F = w1.shape[0]
    assert w2.shape == (F, D) and bias_mat.shape == (N, N)

    # Parameter prep (not the hot path): fuse the two linear weights so the
    # kernel sees a single (D, 2F) = lane-dense operand.
    w12t = jnp.concatenate(
        [jnp.asarray(w1, jnp.float32).T, jnp.asarray(w2, jnp.float32).T], axis=1)  # (D, 2F)

    out_padded = pl.pallas_call(
        attn_head_kernel,
        out_shape=jax.ShapeDtypeStruct((N, 2 * F), jnp.float32),
        in_specs=[
            pl.BlockSpec((N, D), lambda: (0, 0)),
            pl.BlockSpec((N, N), lambda: (0, 0)),
            pl.BlockSpec((D, 2 * F), lambda: (0, 0)),
        ],
        out_specs=pl.BlockSpec((N, 2 * F), lambda: (0, 0)),
    )(jnp.asarray(seq, jnp.float32), jnp.asarray(bias_mat, jnp.float32), w12t)

    # First F columns are the module output; the second half was a free
    # by-product of keeping the value matmul / store 128-lane dense.
    return out_padded[:, :F]


def attn_head_reference(seq, bias_mat, w1, w2):
    """Pure-JAX reference mirroring the PyTorch forward exactly."""
    seq_fts = jnp.tanh(seq @ w1.T)
    seq_fts2 = jnp.tanh(seq @ w2.T)
    logits = (seq_fts2 @ seq_fts.T) / jnp.sqrt(jnp.float32(seq_fts.shape[-1]))
    coefs = jnp.exp(logits) * bias_mat
    coefs = coefs / jnp.sum(coefs, axis=-1)[None, :]
    ret = coefs @ seq_fts
    ret = bias_mat @ ret
    return ret


if __name__ == "__main__":
    N, D, F = 128, 32, 64   # nodes, input features, hidden features

    key = jax.random.PRNGKey(0)
    k_seq, k_bias, k_w1, k_w2 = jax.random.split(key, 4)

    seq = jax.random.normal(k_seq, (N, D), dtype=jnp.float32)

    # binary adjacency-like bias mask with self-loops (keeps row sums > 0)
    bias_mat = (jax.random.uniform(k_bias, (N, N)) > 0.5).astype(jnp.float32)
    bias_mat = jnp.maximum(bias_mat, jnp.eye(N, dtype=jnp.float32))

    # deterministic synthetic parameters (PyTorch w1/w2 shape: (F, D))
    w1 = jax.random.normal(k_w1, (F, D), dtype=jnp.float32) * 0.1
    w2 = jax.random.normal(k_w2, (F, D), dtype=jnp.float32) * 0.1

    out = attn_head_forward(seq, bias_mat, w1, w2)
    out = jax.block_until_ready(out)

    ref = attn_head_reference(seq, bias_mat, w1, w2)
    assert out.shape == (N, F)
    assert jnp.allclose(out, ref, rtol=1e-4, atol=1e-4), "mismatch vs reference"

    print("KERNEL_OK")
</pallas_src>

<mosaic_0001>
module attributes {stable_mosaic.version = 11 : i64} {
  func.func @attn_head_kernel(%arg0: memref<128x32xf32, #tpu.memory_space<vmem>>, %arg1: memref<128x128xf32, #tpu.memory_space<vmem>>, %arg2: memref<32x128xf32, #tpu.memory_space<vmem>>, %arg3: memref<128x128xf32, #tpu.memory_space<vmem>>) attributes {dimension_semantics = [], scalar_prefetch = 0 : i64, scratch_operands = 0 : i64, tpu.core_type = #tpu.core_type<tc>} {
    %c0 = arith.constant 0 : index
    %c0_0 = arith.constant 0 : index
    %0 = vector.load %arg0[%c0, %c0_0] : memref<128x32xf32, #tpu.memory_space<vmem>>, vector<128x32xf32>
    %c0_1 = arith.constant 0 : index
    %c0_2 = arith.constant 0 : index
    %1 = vector.load %arg1[%c0_1, %c0_2] : memref<128x128xf32, #tpu.memory_space<vmem>>, vector<128x128xf32>
    %c0_3 = arith.constant 0 : index
    %c0_4 = arith.constant 0 : index
    %2 = vector.load %arg2[%c0_3, %c0_4] : memref<32x128xf32, #tpu.memory_space<vmem>>, vector<32x128xf32>
    %cst = arith.constant dense<0.000000e+00> : vector<128x128xf32>
    %3 = tpu.matmul %0, %2, %cst {dimension_numbers = #tpu.dot_dimension_numbers<[1], [0], [0], [1], [0, 0, 1, 1], [], []>} : vector<128x32xf32>, vector<32x128xf32>, vector<128x128xf32> -> vector<128x128xf32>
    %4 = math.tanh %3 : vector<128x128xf32>
    %5 = vector.extract_strided_slice %4 {offsets = [0, 0], sizes = [128, 64], strides = [1, 1]} : vector<128x128xf32> to vector<128x64xf32>
    %cst_5 = arith.constant 6.400000e+01 : f32
    %6 = math.sqrt %cst_5 : f32
    %cst_6 = arith.constant 1.000000e+00 : f32
    %7 = arith.divf %cst_6, %6 : f32
    %8 = vector.extract_strided_slice %4 {offsets = [0, 64], sizes = [128, 64], strides = [1, 1]} : vector<128x128xf32> to vector<128x64xf32>
    %9 = vector.broadcast %7 : f32 to vector<128x64xf32>
    %10 = arith.mulf %8, %9 : vector<128x64xf32>
    %cst_7 = arith.constant dense<0.000000e+00> : vector<128x128xf32>
    %11 = tpu.matmul %10, %5, %cst_7 {dimension_numbers = #tpu.dot_dimension_numbers<[1], [1], [0], [0], [0, 0, 1, 0], [], []>} : vector<128x64xf32>, vector<128x64xf32>, vector<128x128xf32> -> vector<128x128xf32>
    %12 = math.exp %11 : vector<128x128xf32>
    %13 = arith.mulf %12, %1 : vector<128x128xf32>
    %cst_8 = arith.constant dense<0.000000e+00> : vector<128xf32>
    %14 = vector.multi_reduction <add>, %13, %cst_8 [1] : vector<128x128xf32> to vector<128xf32>
    %15 = vector.shape_cast %14 : vector<128xf32> to vector<128x1xf32>
    %16 = tpu.reciprocal %15 : vector<128x1xf32> -> vector<128x1xf32>
    %17 = vector.broadcast %16 : vector<128x1xf32> to vector<128x128xf32>
    %18 = arith.mulf %4, %17 : vector<128x128xf32>
    %cst_9 = arith.constant dense<0.000000e+00> : vector<128x128xf32>
    %19 = tpu.matmul %13, %18, %cst_9 {dimension_numbers = #tpu.dot_dimension_numbers<[1], [0], [0], [1], [0, 0, 1, 1], [], []>} : vector<128x128xf32>, vector<128x128xf32>, vector<128x128xf32> -> vector<128x128xf32>
    %cst_10 = arith.constant dense<0.000000e+00> : vector<128x128xf32>
    %20 = tpu.matmul %1, %19, %cst_10 {dimension_numbers = #tpu.dot_dimension_numbers<[1], [0], [0], [1], [0, 0, 1, 1], [], []>} : vector<128x128xf32>, vector<128x128xf32>, vector<128x128xf32> -> vector<128x128xf32>
    %c0_11 = arith.constant 0 : index
    %c0_12 = arith.constant 0 : index
    %21 = vector.load %arg3[%c0_11, %c0_12] : memref<128x128xf32, #tpu.memory_space<vmem>>, vector<128x128xf32>
    tpu.vector_store %arg3[%c0_11, %c0_12], %20 {strides = array<i32>} : memref<128x128xf32, #tpu.memory_space<vmem>>, vector<128x128xf32>,
    return
  }
}

</mosaic_0001>

<llo_original>
// kernel: tpu_custom_call.1
$region0: #{tpu_custom_call.1}
  #allocation0 [shape = 'u32[]', space=smem, size = 0x4, offset = 0x4, fixed_abs, tag = 'smem constant byte address 0x4 - core index']
  #allocation1 [shape = 'u32[144,128]{1,0:T(1,128)}', space=vmem, size = 0x12000, scoped, tag = 'internal scratch']
  %s0 = inlined_call_operand.vmem [shape: f32[128,32], index: 0, kind: input, shape index: {}]
  %s1 = inlined_call_operand.vmem [shape: f32[128,128], index: 1, kind: input, shape index: {}]
  %s2 = inlined_call_operand.vmem [shape: f32[32,128], index: 2, kind: input, shape index: {}]
  %s3 = inlined_call_operand.hbm [shape: f32[128,128], index: 3, kind: output, shape index: {}]
  %s4 = sld [smem:[#allocation0]]
  $region22: #{tpu_custom_call.1} parent=0
    _
  %s6 = ssub.s32 1, %s4
  %s7 = scalar_select 0, %s6, %s4
  $region1: #{tpu_custom_call.1} parent=0
    #allocation2 [shape = 'u8[65536]{0}', space=vmem, size = 0x10000, scoped, tag = 'output window, operand 0, single buffered']
    #allocation3 [shape = 's32[1]{0}', space=sflag, size = 0x4, scoped, tag = 'scoped memory for tpu_custom_call.1']
    %8 = vsyncpa [#allocation3], 0
    // Predicated region
    $region2: #{tpu_custom_call.1} parent=1 // pred_check
      _
    $region3: #{tpu_custom_call.1} parent=1 // pred_check_branch
      %10 = sbr.rel (0) target = $region5
    $region4: #{tpu_custom_call.1} parent=1 // pred_region
      _
    $region5: #{tpu_custom_call.1} parent=1 // pred_fallthru
      _
    // Predicated region
    $region6: #{tpu_custom_call.1} parent=1 // pred_check
      _
    $region7: #{tpu_custom_call.1} parent=1 // pred_check_branch
      %12 = sbr.rel (0) target = $region9
    $region8: #{tpu_custom_call.1} parent=1 // pred_region
      _
    $region9: #{tpu_custom_call.1} parent=1 // pred_fallthru
      _
    // Predicated region
    $region10: #{tpu_custom_call.1} parent=1 // pred_check
      _
    $region11: #{tpu_custom_call.1} parent=1 // pred_check_branch
      %14 = sbr.rel (0) target = $region13
    $region12: #{tpu_custom_call.1} parent=1 // pred_region
      _
    $region13: #{tpu_custom_call.1} parent=1 // pred_fallthru
      _
    %v15 = vld [vmem:[%s0] sm:$0xff]
    %v16 = vld [vmem:[%s0 + $0x8] sm:$0xff]
    %v17 = vld [vmem:[%s0 + $0x10] sm:$0xff]
    %v18 = vld [vmem:[%s0 + $0x18] sm:$0xff]
    %v19 = vld [vmem:[%s0 + $0x20] sm:$0xff]
    %v20 = vld [vmem:[%s0 + $0x28] sm:$0xff]
    %v21 = vld [vmem:[%s0 + $0x30] sm:$0xff]
    %v22 = vld [vmem:[%s0 + $0x38] sm:$0xff]
    %v23 = vld [vmem:[%s0 + $0x40] sm:$0xff]
    %v24 = vld [vmem:[%s0 + $0x48] sm:$0xff]
    %v25 = vld [vmem:[%s0 + $0x50] sm:$0xff]
    %v26 = vld [vmem:[%s0 + $0x58] sm:$0xff]
    %v27 = vld [vmem:[%s0 + $0x60] sm:$0xff]
    %v28 = vld [vmem:[%s0 + $0x68] sm:$0xff]
    %v29 = vld [vmem:[%s0 + $0x70] sm:$0xff]
    %v30 = vld [vmem:[%s0 + $0x78] sm:$0xff]
    %v31 = vld [vmem:[%s1] sm:$0xff]
    %v32 = vld [vmem:[%s1 + $0x8] sm:$0xff]
    %v33 = vld [vmem:[%s1 + $0x10] sm:$0xff]
    %v34 = vld [vmem:[%s1 + $0x18] sm:$0xff]
    %v35 = vld [vmem:[%s1 + $0x20] sm:$0xff]
    %v36 = vld [vmem:[%s1 + $0x28] sm:$0xff]
    %v37 = vld [vmem:[%s1 + $0x30] sm:$0xff]
    %v38 = vld [vmem:[%s1 + $0x38] sm:$0xff]
    %v39 = vld [vmem:[%s1 + $0x40] sm:$0xff]
    %v40 = vld [vmem:[%s1 + $0x48] sm:$0xff]
    %v41 = vld [vmem:[%s1 + $0x50] sm:$0xff]
    %v42 = vld [vmem:[%s1 + $0x58] sm:$0xff]
    %v43 = vld [vmem:[%s1 + $0x60] sm:$0xff]
    %v44 = vld [vmem:[%s1 + $0x68] sm:$0xff]
    %v45 = vld [vmem:[%s1 + $0x70] sm:$0xff]
    %v46 = vld [vmem:[%s1 + $0x78] sm:$0xff]
    %v47 = vld [vmem:[%s2] sm:$0xff]
    %v48 = vld [vmem:[%s2 + $0x8] sm:$0xff]
    %v49 = vld [vmem:[%s2 + $0x10] sm:$0xff]
    %v50 = vld [vmem:[%s2 + $0x18] sm:$0xff]
    %vm51 = vcmask 261120
    %v53 = vsel %vm51, %v15, 0
    %v56 = vsel %vm51, %v16, 0
    %v59 = vsel %vm51, %v17, 0
    %v62 = vsel %vm51, %v18, 0
    %v65 = vsel %vm51, %v19, 0
    %v68 = vsel %vm51, %v20, 0
    %v71 = vsel %vm51, %v21, 0
    %v74 = vsel %vm51, %v22, 0
    %v77 = vsel %vm51, %v23, 0
    %v80 = vsel %vm51, %v24, 0
    %v83 = vsel %vm51, %v25, 0
    %v86 = vsel %vm51, %v26, 0
    %v89 = vsel %vm51, %v27, 0
    %v92 = vsel %vm51, %v28, 0
    %v95 = vsel %vm51, %v29, 0
    %v98 = vsel %vm51, %v30, 0
    %100 = vmatprep.subr.mxu0 0.0
    %101 = vmatpush1.msra.mxu0 0.0
    %102 = vmatprep.subr.mxu0 0.0
    %103 = vmatpush1.msra.mxu0 0.0
    %104 = vmatprep.subr.mxu0 0.0
    %105 = vmatpush1.msra.mxu0 0.0
    %106 = vmatprep.subr.mxu0 0.0
    %107 = vmatpush1.msra.mxu0 0.0
    %108 = vmatprep.subr.mxu0 0.0
    %109 = vmatpush1.msra.mxu0 0.0
    %110 = vmatprep.subr.mxu0 0.0
    %111 = vmatpush1.msra.mxu0 0.0
    %112 = vmatprep.subr.mxu0 0.0
    %113 = vmatpush1.msra.mxu0 0.0
    %114 = vmatprep.subr.mxu0 0.0
    %115 = vmatpush1.msra.mxu0 0.0
    %116 = vmatprep.subr.mxu0 0.0
    %117 = vmatpush1.msra.mxu0 0.0
    %118 = vmatprep.subr.mxu0 0.0
    %119 = vmatpush1.msra.mxu0 0.0
    %120 = vmatprep.subr.mxu0 0.0
    %121 = vmatpush1.msra.mxu0 0.0
    %122 = vmatprep.subr.mxu0 0.0
    %123 = vmatpush1.msra.mxu0 0.0
    %124 = vmatprep.subr.mxu0 0.0
    %125 = vmatpush1.msra.mxu0 %v50
    %126 = vmatprep.subr.mxu0 0.0
    %127 = vmatpush1.msra.mxu0 %v49
    %128 = vmatprep.subr.mxu0 0.0
    %129 = vmatpush1.msra.mxu0 %v48
    %130 = vmatprep.subr.mxu0 0.0
    %131 = vmatpush1.msra.mxu0 %v47
    %132 = vmatprep.subr.mxu0 0.0
    %133 = vmatpush2.msra.mxu0 0.0
    %134 = vmatprep.subr.mxu0 0.0
    %135 = vmatpush2.msra.mxu0 0.0
    %136 = vmatprep.subr.mxu0 0.0
    %137 = vmatpush2.msra.mxu0 0.0
    %138 = vmatprep.subr.mxu0 0.0
    %139 = vmatpush2.msra.mxu0 0.0
    %140 = vmatprep.subr.mxu0 0.0
    %141 = vmatpush2.msra.mxu0 0.0
    %142 = vmatprep.subr.mxu0 0.0
    %143 = vmatpush2.msra.mxu0 0.0
    %144 = vmatprep.subr.mxu0 0.0
    %145 = vmatpush2.msra.mxu0 0.0
    %146 = vmatprep.subr.mxu0 0.0
    %147 = vmatpush2.msra.mxu0 0.0
    %148 = vmatprep.subr.mxu0 0.0
    %149 = vmatpush2.msra.mxu0 0.0
    %150 = vmatprep.subr.mxu0 0.0
    %151 = vmatpush2.msra.mxu0 0.0
    %152 = vmatprep.subr.mxu0 0.0
    %153 = vmatpush2.msra.mxu0 0.0
    %154 = vmatprep.subr.mxu0 0.0
    %155 = vmatpush2.msra.mxu0 0.0
    %156 = vmatprep.subr.mxu0 0.0
    %157 = vmatpush2.msra.mxu0 0.0
    %158 = vmatprep.subr.mxu0 0.0
    %159 = vmatpush2.msra.mxu0 0.0
    %160 = vmatprep.subr.mxu0 0.0
    %161 = vmatpush2.msra.mxu0 0.0
    %162 = vmatprep.subr.mxu0 0.0
    %163 = vmatpush2.msra.mxu0 0.0
    %164 = vmatprep.mubr.f32.mxu0 0.0
    %165 = vmatmul.mubr.f32.gmra.mxu0 %v53
    %v166 = vpop.f32.mrf.mxu0
    %v167 = vadd.f32 0.0, %v166
    %v168 = vpop.f32.mrf.mxu0
    %169 = vmatprep.mubr.f32.mxu0 0.0
    %170 = vmatmul.mubr.f32.gmra.mxu0 %v56
    %v171 = vpop.f32.mrf.mxu0
    %v172 = vadd.f32 0.0, %v171
    %v173 = vpop.f32.mrf.mxu0
    %174 = vmatprep.mubr.f32.mxu0 0.0
    %175 = vmatmul.mubr.f32.gmra.mxu0 %v59
    %v176 = vpop.f32.mrf.mxu0
    %v177 = vadd.f32 0.0, %v176
    %v178 = vpop.f32.mrf.mxu0
    %179 = vmatprep.mubr.f32.mxu0 0.0
    %180 = vmatmul.mubr.f32.gmra.mxu0 %v62
    %v181 = vpop.f32.mrf.mxu0
    %v182 = vadd.f32 0.0, %v181
    %v183 = vpop.f32.mrf.mxu0
    %184 = vmatprep.mubr.f32.mxu0 0.0
    %185 = vmatmul.mubr.f32.gmra.mxu0 %v65
    %v186 = vpop.f32.mrf.mxu0
    %v187 = vadd.f32 0.0, %v186
    %v188 = vpop.f32.mrf.mxu0
    %189 = vmatprep.mubr.f32.mxu0 0.0
    %190 = vmatmul.mubr.f32.gmra.mxu0 %v68
    %v191 = vpop.f32.mrf.mxu0
    %v192 = vadd.f32 0.0, %v191
    %v193 = vpop.f32.mrf.mxu0
    %194 = vmatprep.mubr.f32.mxu0 0.0
    %195 = vmatmul.mubr.f32.gmra.mxu0 %v71
    %v196 = vpop.f32.mrf.mxu0
    %v197 = vadd.f32 0.0, %v196
    %v198 = vpop.f32.mrf.mxu0
    %199 = vmatprep.mubr.f32.mxu0 0.0
    %200 = vmatmul.mubr.f32.gmra.mxu0 %v74
    %v201 = vpop.f32.mrf.mxu0
    %v202 = vadd.f32 0.0, %v201
    %v203 = vpop.f32.mrf.mxu0
    %204 = vmatprep.mubr.f32.mxu0 0.0
    %205 = vmatmul.mubr.f32.gmra.mxu0 %v77
    %v206 = vpop.f32.mrf.mxu0
    %v207 = vadd.f32 0.0, %v206
    %v208 = vpop.f32.mrf.mxu0
    %209 = vmatprep.mubr.f32.mxu0 0.0
    %210 = vmatmul.mubr.f32.gmra.mxu0 %v80
    %v211 = vpop.f32.mrf.mxu0
    %v212 = vadd.f32 0.0, %v211
    %v213 = vpop.f32.mrf.mxu0
    %214 = vmatprep.mubr.f32.mxu0 0.0
    %215 = vmatmul.mubr.f32.gmra.mxu0 %v83
    %v216 = vpop.f32.mrf.mxu0
    %v217 = vadd.f32 0.0, %v216
    %v218 = vpop.f32.mrf.mxu0
    %219 = vmatprep.mubr.f32.mxu0 0.0
    %220 = vmatmul.mubr.f32.gmra.mxu0 %v86
    %v221 = vpop.f32.mrf.mxu0
    %v222 = vadd.f32 0.0, %v221
    %v223 = vpop.f32.mrf.mxu0
    %224 = vmatprep.mubr.f32.mxu0 0.0
    %225 = vmatmul.mubr.f32.gmra.mxu0 %v89
    %v226 = vpop.f32.mrf.mxu0
    %v227 = vadd.f32 0.0, %v226
    %v228 = vpop.f32.mrf.mxu0
    %229 = vmatprep.mubr.f32.mxu0 0.0
    %230 = vmatmul.mubr.f32.gmra.mxu0 %v92
    %v231 = vpop.f32.mrf.mxu0
    %v232 = vadd.f32 0.0, %v231
    %v233 = vpop.f32.mrf.mxu0
    %234 = vmatprep.mubr.f32.mxu0 0.0
    %235 = vmatmul.mubr.f32.gmra.mxu0 %v95
    %v236 = vpop.f32.mrf.mxu0
    %v237 = vadd.f32 0.0, %v236
    %v238 = vpop.f32.mrf.mxu0
    %239 = vmatprep.mubr.f32.mxu0 0.0
    %240 = vmatmul.mubr.f32.gmra.mxu0 %v98
    %v241 = vpop.f32.mrf.mxu0
    %v242 = vadd.f32 0.0, %v241
    %v243 = vpop.f32.mrf.mxu0
    %244 = vdwg.mxu0
    %v245 = vtanh.pop %v167
    %v246 = vtanh.pop %v172
    %v247 = vtanh.pop %v177
    %v248 = vtanh.pop %v182
    %v249 = vtanh.pop %v187
    %v250 = vtanh.pop %v192
    %v251 = vtanh.pop %v197
    %v252 = vtanh.pop %v202
    %v253 = vtanh.pop %v207
    %v254 = vtanh.pop %v212
    %v255 = vtanh.pop %v217
    %v256 = vtanh.pop %v222
    %v257 = vtanh.pop %v227
    %v258 = vtanh.pop %v232
    %v259 = vtanh.pop %v237
    %v260 = vtanh.pop %v242
    %v261 = vmul.f32 %v245, 0.125
    %v262 = vmul.f32 %v246, 0.125
    %v263 = vmul.f32 %v247, 0.125
    %v264 = vmul.f32 %v248, 0.125
    %v265 = vmul.f32 %v249, 0.125
    %v266 = vmul.f32 %v250, 0.125
    %v267 = vmul.f32 %v251, 0.125
    %v268 = vmul.f32 %v252, 0.125
    %v269 = vmul.f32 %v253, 0.125
    %v270 = vmul.f32 %v254, 0.125
    %v271 = vmul.f32 %v255, 0.125
    %v272 = vmul.f32 %v256, 0.125
    %v273 = vmul.f32 %v257, 0.125
    %v274 = vmul.f32 %v258, 0.125
    %v275 = vmul.f32 %v259, 0.125
    %v276 = vmul.f32 %v260, 0.125
    %293 = vrot.lane.b32.xlu0 %v261, 64
    %v294 = vpop.permute.xlu0 %293
    %295 = vrot.lane.b32.xlu0 %v262, 64
    %v296 = vpop.permute.xlu0 %295
    %297 = vrot.lane.b32.xlu0 %v263, 64
    %v298 = vpop.permute.xlu0 %297
    %299 = vrot.lane.b32.xlu0 %v264, 64
    %v300 = vpop.permute.xlu0 %299
    %301 = vrot.lane.b32.xlu0 %v265, 64
    %v302 = vpop.permute.xlu0 %301
    %303 = vrot.lane.b32.xlu0 %v266, 64
    %v304 = vpop.permute.xlu0 %303
    %305 = vrot.lane.b32.xlu0 %v267, 64
    %v306 = vpop.permute.xlu0 %305
    %307 = vrot.lane.b32.xlu0 %v268, 64
    %v308 = vpop.permute.xlu0 %307
    %309 = vrot.lane.b32.xlu0 %v269, 64
    %v310 = vpop.permute.xlu0 %309
    %311 = vrot.lane.b32.xlu0 %v270, 64
    %v312 = vpop.permute.xlu0 %311
    %313 = vrot.lane.b32.xlu0 %v271, 64
    %v314 = vpop.permute.xlu0 %313
    %315 = vrot.lane.b32.xlu0 %v272, 64
    %v316 = vpop.permute.xlu0 %315
    %317 = vrot.lane.b32.xlu0 %v273, 64
    %v318 = vpop.permute.xlu0 %317
    %319 = vrot.lane.b32.xlu0 %v274, 64
    %v320 = vpop.permute.xlu0 %319
    %321 = vrot.lane.b32.xlu0 %v275, 64
    %v322 = vpop.permute.xlu0 %321
    %323 = vrot.lane.b32.xlu0 %v276, 64
    %v324 = vpop.permute.xlu0 %323
    %vm325 = vcmask 523264
    %v326 = vsel %vm325, %v294, 0
    %v328 = vsel %vm325, %v296, 0
    %v330 = vsel %vm325, %v298, 0
    %v332 = vsel %vm325, %v300, 0
    %v334 = vsel %vm325, %v302, 0
    %v336 = vsel %vm325, %v304, 0
    %v338 = vsel %vm325, %v306, 0
    %v340 = vsel %vm325, %v308, 0
    %v342 = vsel %vm325, %v310, 0
    %v344 = vsel %vm325, %v312, 0
    %v346 = vsel %vm325, %v314, 0
    %v348 = vsel %vm325, %v316, 0
    %v350 = vsel %vm325, %v318, 0
    %v352 = vsel %vm325, %v320, 0
    %v354 = vsel %vm325, %v322, 0
    %v356 = vsel %vm325, %v324, 0
    %v359 = vsel %vm325, %v245, 0
    %v362 = vsel %vm325, %v246, 0
    %v365 = vsel %vm325, %v247, 0
    %v368 = vsel %vm325, %v248, 0
    %v371 = vsel %vm325, %v249, 0
    %v374 = vsel %vm325, %v250, 0
    %v377 = vsel %vm325, %v251, 0
    %v380 = vsel %vm325, %v252, 0
    %v383 = vsel %vm325, %v253, 0
    %v386 = vsel %vm325, %v254, 0
    %v389 = vsel %vm325, %v255, 0
    %v392 = vsel %vm325, %v256, 0
    %v395 = vsel %vm325, %v257, 0
    %v398 = vsel %vm325, %v258, 0
    %v401 = vsel %vm325, %v259, 0
    %v404 = vsel %vm325, %v260, 0
    %406 = vmatprep.subr.mxu0 0.0
    %407 = vmatpush1.xpose.msra.mxu0 %v404
    %408 = vmatprep.subr.mxu0 0.0
    %409 = vmatpush1.xpose.msra.mxu0 %v401
    %410 = vmatprep.subr.mxu0 0.0
    %411 = vmatpush1.xpose.msra.mxu0 %v398
    %412 = vmatprep.subr.mxu0 0.0
    %413 = vmatpush1.xpose.msra.mxu0 %v395
    %414 = vmatprep.subr.mxu0 0.0
    %415 = vmatpush1.xpose.msra.mxu0 %v392
    %416 = vmatprep.subr.mxu0 0.0
    %417 = vmatpush1.xpose.msra.mxu0 %v389
    %418 = vmatprep.subr.mxu0 0.0
    %419 = vmatpush1.xpose.msra.mxu0 %v386
    %420 = vmatprep.subr.mxu0 0.0
    %421 = vmatpush1.xpose.msra.mxu0 %v383
    %422 = vmatprep.subr.mxu0 0.0
    %423 = vmatpush1.xpose.msra.mxu0 %v380
    %424 = vmatprep.subr.mxu0 0.0
    %425 = vmatpush1.xpose.msra.mxu0 %v377
    %426 = vmatprep.subr.mxu0 0.0
    %427 = vmatpush1.xpose.msra.mxu0 %v374
    %428 = vmatprep.subr.mxu0 0.0
    %429 = vmatpush1.xpose.msra.mxu0 %v371
    %430 = vmatprep.subr.mxu0 0.0
    %431 = vmatpush1.xpose.msra.mxu0 %v368
    %432 = vmatprep.subr.mxu0 0.0
    %433 = vmatpush1.xpose.msra.mxu0 %v365
    %434 = vmatprep.subr.mxu0 0.0
    %435 = vmatpush1.xpose.msra.mxu0 %v362
    %436 = vmatprep.subr.mxu0 0.0
    %437 = vmatpush1.xpose.msra.mxu0 %v359
    %438 = vmatprep.subr.mxu0 0.0
    %439 = vmatpush2.xpose.msra.mxu0 0.0
    %440 = vmatprep.subr.mxu0 0.0
    %441 = vmatpush2.xpose.msra.mxu0 0.0
    %442 = vmatprep.subr.mxu0 0.0
    %443 = vmatpush2.xpose.msra.mxu0 0.0
    %444 = vmatprep.subr.mxu0 0.0
    %445 = vmatpush2.xpose.msra.mxu0 0.0
    %446 = vmatprep.subr.mxu0 0.0
    %447 = vmatpush2.xpose.msra.mxu0 0.0
    %448 = vmatprep.subr.mxu0 0.0
    %449 = vmatpush2.xpose.msra.mxu0 0.0
    %450 = vmatprep.subr.mxu0 0.0
    %451 = vmatpush2.xpose.msra.mxu0 0.0
    %452 = vmatprep.subr.mxu0 0.0
    %453 = vmatpush2.xpose.msra.mxu0 0.0
    %454 = vmatprep.subr.mxu0 0.0
    %455 = vmatpush2.xpose.msra.mxu0 0.0
    %456 = vmatprep.subr.mxu0 0.0
    %457 = vmatpush2.xpose.msra.mxu0 0.0
    %458 = vmatprep.subr.mxu0 0.0
    %459 = vmatpush2.xpose.msra.mxu0 0.0
    %460 = vmatprep.subr.mxu0 0.0
    %461 = vmatpush2.xpose.msra.mxu0 0.0
    %462 = vmatprep.subr.mxu0 0.0
    %463 = vmatpush2.xpose.msra.mxu0 0.0
    %464 = vmatprep.subr.mxu0 0.0
    %465 = vmatpush2.xpose.msra.mxu0 0.0
    %466 = vmatprep.subr.mxu0 0.0
    %467 = vmatpush2.xpose.msra.mxu0 0.0
    %468 = vmatprep.subr.mxu0 0.0
    %469 = vmatpush2.xpose.msra.mxu0 0.0
    %470 = vmatprep.mubr.f32.mxu0 0.0
    %471 = vmatmul.mubr.f32.gmra.mxu0 %v326
    %v472 = vpop.f32.mrf.mxu0
    %v473 = vadd.f32 0.0, %v472
    %v474 = vpop.f32.mrf.mxu0
    %475 = vmatprep.mubr.f32.mxu0 0.0
    %476 = vmatmul.mubr.f32.gmra.mxu0 %v328
    %v477 = vpop.f32.mrf.mxu0
    %v478 = vadd.f32 0.0, %v477
    %v479 = vpop.f32.mrf.mxu0
    %480 = vmatprep.mubr.f32.mxu0 0.0
    %481 = vmatmul.mubr.f32.gmra.mxu0 %v330
    %v482 = vpop.f32.mrf.mxu0
    %v483 = vadd.f32 0.0, %v482
    %v484 = vpop.f32.mrf.mxu0
    %485 = vmatprep.mubr.f32.mxu0 0.0
    %486 = vmatmul.mubr.f32.gmra.mxu0 %v332
    %v487 = vpop.f32.mrf.mxu0
    %v488 = vadd.f32 0.0, %v487
    %v489 = vpop.f32.mrf.mxu0
    %490 = vmatprep.mubr.f32.mxu0 0.0
    %491 = vmatmul.mubr.f32.gmra.mxu0 %v334
    %v492 = vpop.f32.mrf.mxu0
    %v493 = vadd.f32 0.0, %v492
    %v494 = vpop.f32.mrf.mxu0
    %495 = vmatprep.mubr.f32.mxu0 0.0
    %496 = vmatmul.mubr.f32.gmra.mxu0 %v336
    %v497 = vpop.f32.mrf.mxu0
    %v498 = vadd.f32 0.0, %v497
    %v499 = vpop.f32.mrf.mxu0
    %500 = vmatprep.mubr.f32.mxu0 0.0
    %501 = vmatmul.mubr.f32.gmra.mxu0 %v338
    %v502 = vpop.f32.mrf.mxu0
    %v503 = vadd.f32 0.0, %v502
    %v504 = vpop.f32.mrf.mxu0
    %505 = vmatprep.mubr.f32.mxu0 0.0
    %506 = vmatmul.mubr.f32.gmra.mxu0 %v340
    %v507 = vpop.f32.mrf.mxu0
    %v508 = vadd.f32 0.0, %v507
    %v509 = vpop.f32.mrf.mxu0
    %510 = vmatprep.mubr.f32.mxu0 0.0
    %511 = vmatmul.mubr.f32.gmra.mxu0 %v342
    %v512 = vpop.f32.mrf.mxu0
    %v513 = vadd.f32 0.0, %v512
    %v514 = vpop.f32.mrf.mxu0
    %515 = vmatprep.mubr.f32.mxu0 0.0
    %516 = vmatmul.mubr.f32.gmra.mxu0 %v344
    %v517 = vpop.f32.mrf.mxu0
    %v518 = vadd.f32 0.0, %v517
    %v519 = vpop.f32.mrf.mxu0
    %520 = vmatprep.mubr.f32.mxu0 0.0
    %521 = vmatmul.mubr.f32.gmra.mxu0 %v346
    %v522 = vpop.f32.mrf.mxu0
    %v523 = vadd.f32 0.0, %v522
    %v524 = vpop.f32.mrf.mxu0
    %525 = vmatprep.mubr.f32.mxu0 0.0
    %526 = vmatmul.mubr.f32.gmra.mxu0 %v348
    %v527 = vpop.f32.mrf.mxu0
    %v528 = vadd.f32 0.0, %v527
    %v529 = vpop.f32.mrf.mxu0
    %530 = vmatprep.mubr.f32.mxu0 0.0
    %531 = vmatmul.mubr.f32.gmra.mxu0 %v350
    %v532 = vpop.f32.mrf.mxu0
    %v533 = vadd.f32 0.0, %v532
    %v534 = vpop.f32.mrf.mxu0
    %535 = vmatprep.mubr.f32.mxu0 0.0
    %536 = vmatmul.mubr.f32.gmra.mxu0 %v352
    %v537 = vpop.f32.mrf.mxu0
    %v538 = vadd.f32 0.0, %v537
    %v539 = vpop.f32.mrf.mxu0
    %540 = vmatprep.mubr.f32.mxu0 0.0
    %541 = vmatmul.mubr.f32.gmra.mxu0 %v354
    %v542 = vpop.f32.mrf.mxu0
    %v543 = vadd.f32 0.0, %v542
    %v544 = vpop.f32.mrf.mxu0
    %545 = vmatprep.mubr.f32.mxu0 0.0
    %546 = vmatmul.mubr.f32.gmra.mxu0 %v356
    %v547 = vpop.f32.mrf.mxu0
    %v548 = vadd.f32 0.0, %v547
    %v549 = vpop.f32.mrf.mxu0
    %550 = vdwg.mxu0
    %v551 = vmul.f32 %v473, 1.442695
    %v552 = vpow.pop %v551
    %v553 = vmul.f32 %v478, 1.442695
    %v554 = vpow.pop %v553
    %v555 = vmul.f32 %v483, 1.442695
    %v556 = vpow.pop %v555
    %v557 = vmul.f32 %v488, 1.442695
    %v558 = vpow.pop %v557
    %v559 = vmul.f32 %v493, 1.442695
    %v560 = vpow.pop %v559
    %v561 = vmul.f32 %v498, 1.442695
    %v562 = vpow.pop %v561
    %v563 = vmul.f32 %v503, 1.442695
    %v564 = vpow.pop %v563
    %v565 = vmul.f32 %v508, 1.442695
    %v566 = vpow.pop %v565
    %v567 = vmul.f32 %v513, 1.442695
    %v568 = vpow.pop %v567
    %v569 = vmul.f32 %v518, 1.442695
    %v570 = vpow.pop %v569
    %v571 = vmul.f32 %v523, 1.442695
    %v572 = vpow.pop %v571
    %v573 = vmul.f32 %v528, 1.442695
    %v574 = vpow.pop %v573
    %v575 = vmul.f32 %v533, 1.442695
    %v576 = vpow.pop %v575
    %v577 = vmul.f32 %v538, 1.442695
    %v578 = vpow.pop %v577
    %v579 = vmul.f32 %v543, 1.442695
    %v580 = vpow.pop %v579
    %v581 = vmul.f32 %v548, 1.442695
    %v582 = vpow.pop %v581
    %v583 = vmul.f32 %v552, %v31
    %v584 = vmul.f32 %v554, %v32
    %v585 = vmul.f32 %v556, %v33
    %v586 = vmul.f32 %v558, %v34
    %v587 = vmul.f32 %v560, %v35
    %v588 = vmul.f32 %v562, %v36
    %v589 = vmul.f32 %v564, %v37
    %v590 = vmul.f32 %v566, %v38
    %v591 = vmul.f32 %v568, %v39
    %v592 = vmul.f32 %v570, %v40
    %v593 = vmul.f32 %v572, %v41
    %v594 = vmul.f32 %v574, %v42
    %v595 = vmul.f32 %v576, %v43
    %v596 = vmul.f32 %v578, %v44
    %v597 = vmul.f32 %v580, %v45
    %v598 = vmul.f32 %v582, %v46
    %599 = vadd.xlane.f32.xlu0 %v583
    %v600 = vpop.xlane.xlu0 %599
    %601 = vadd.xlane.f32.xlu0 %v584
    %v602 = vpop.xlane.xlu0 %601
    %603 = vadd.xlane.f32.xlu0 %v585
    %v604 = vpop.xlane.xlu0 %603
    %605 = vadd.xlane.f32.xlu0 %v586
    %v606 = vpop.xlane.xlu0 %605
    %607 = vadd.xlane.f32.xlu0 %v587
    %v608 = vpop.xlane.xlu0 %607
    %609 = vadd.xlane.f32.xlu0 %v588
    %v610 = vpop.xlane.xlu0 %609
    %611 = vadd.xlane.f32.xlu0 %v589
    %v612 = vpop.xlane.xlu0 %611
    %613 = vadd.xlane.f32.xlu0 %v590
    %v614 = vpop.xlane.xlu0 %613
    %615 = vadd.xlane.f32.xlu0 %v591
    %v616 = vpop.xlane.xlu0 %615
    %617 = vadd.xlane.f32.xlu0 %v592
    %v618 = vpop.xlane.xlu0 %617
    %619 = vadd.xlane.f32.xlu0 %v593
    %v620 = vpop.xlane.xlu0 %619
    %621 = vadd.xlane.f32.xlu0 %v594
    %v622 = vpop.xlane.xlu0 %621
    %623 = vadd.xlane.f32.xlu0 %v595
    %v624 = vpop.xlane.xlu0 %623
    %625 = vadd.xlane.f32.xlu0 %v596
    %v626 = vpop.xlane.xlu0 %625
    %627 = vadd.xlane.f32.xlu0 %v597
    %v628 = vpop.xlane.xlu0 %627
    %629 = vadd.xlane.f32.xlu0 %v598
    %v630 = vpop.xlane.xlu0 %629
    %v631 = vrcp.pop %v600
    %v632 = vrcp.pop %v602
    %v633 = vrcp.pop %v604
    %v634 = vrcp.pop %v606
    %v635 = vrcp.pop %v608
    %v636 = vrcp.pop %v610
    %v637 = vrcp.pop %v612
    %v638 = vrcp.pop %v614
    %v639 = vrcp.pop %v616
    %v640 = vrcp.pop %v618
    %v641 = vrcp.pop %v620
    %v642 = vrcp.pop %v622
    %v643 = vrcp.pop %v624
    %v644 = vrcp.pop %v626
    %v645 = vrcp.pop %v628
    %v646 = vrcp.pop %v630
    %v647 = vmul.f32 %v245, %v631
    %v648 = vmul.f32 %v246, %v632
    %v649 = vmul.f32 %v247, %v633
    %v650 = vmul.f32 %v248, %v634
    %v651 = vmul.f32 %v249, %v635
    %v652 = vmul.f32 %v250, %v636
    %v653 = vmul.f32 %v251, %v637
    %v654 = vmul.f32 %v252, %v638
    %v655 = vmul.f32 %v253, %v639
    %v656 = vmul.f32 %v254, %v640
    %v657 = vmul.f32 %v255, %v641
    %v658 = vmul.f32 %v256, %v642
    %v659 = vmul.f32 %v257, %v643
    %v660 = vmul.f32 %v258, %v644
    %v661 = vmul.f32 %v259, %v645
    %v662 = vmul.f32 %v260, %v646
    %663 = vmatprep.subr.mxu0 0.0
    %664 = vmatpush1.msra.mxu0 %v662
    %665 = vmatprep.subr.mxu0 0.0
    %666 = vmatpush1.msra.mxu0 %v661
    %667 = vmatprep.subr.mxu0 0.0
    %668 = vmatpush1.msra.mxu0 %v660
    %669 = vmatprep.subr.mxu0 0.0
    %670 = vmatpush1.msra.mxu0 %v659
    %671 = vmatprep.subr.mxu0 0.0
    %672 = vmatpush1.msra.mxu0 %v658
    %673 = vmatprep.subr.mxu0 0.0
    %674 = vmatpush1.msra.mxu0 %v657
    %675 = vmatprep.subr.mxu0 0.0
    %676 = vmatpush1.msra.mxu0 %v656
    %677 = vmatprep.subr.mxu0 0.0
    %678 = vmatpush1.msra.mxu0 %v655
    %679 = vmatprep.subr.mxu0 0.0
    %680 = vmatpush1.msra.mxu0 %v654
    %681 = vmatprep.subr.mxu0 0.0
    %682 = vmatpush1.msra.mxu0 %v653
    %683 = vmatprep.subr.mxu0 0.0
    %684 = vmatpush1.msra.mxu0 %v652
    %685 = vmatprep.subr.mxu0 0.0
    %686 = vmatpush1.msra.mxu0 %v651
    %687 = vmatprep.subr.mxu0 0.0
    %688 = vmatpush1.msra.mxu0 %v650
    %689 = vmatprep.subr.mxu0 0.0
    %690 = vmatpush1.msra.mxu0 %v649
    %691 = vmatprep.subr.mxu0 0.0
    %692 = vmatpush1.msra.mxu0 %v648
    %693 = vmatprep.subr.mxu0 0.0
    %694 = vmatpush1.msra.mxu0 %v647
    %695 = vmatprep.subr.mxu0 0.0
    %696 = vmatpush2.msra.mxu0 0.0
    %697 = vmatprep.subr.mxu0 0.0
    %698 = vmatpush2.msra.mxu0 0.0
    %699 = vmatprep.subr.mxu0 0.0
    %700 = vmatpush2.msra.mxu0 0.0
    %701 = vmatprep.subr.mxu0 0.0
    %702 = vmatpush2.msra.mxu0 0.0
    %703 = vmatprep.subr.mxu0 0.0
    %704 = vmatpush2.msra.mxu0 0.0
    %705 = vmatprep.subr.mxu0 0.0
    %706 = vmatpush2.msra.mxu0 0.0
    %707 = vmatprep.subr.mxu0 0.0
    %708 = vmatpush2.msra.mxu0 0.0
    %709 = vmatprep.subr.mxu0 0.0
    %710 = vmatpush2.msra.mxu0 0.0
    %711 = vmatprep.subr.mxu0 0.0
    %712 = vmatpush2.msra.mxu0 0.0
    %713 = vmatprep.subr.mxu0 0.0
    %714 = vmatpush2.msra.mxu0 0.0
    %715 = vmatprep.subr.mxu0 0.0
    %716 = vmatpush2.msra.mxu0 0.0
    %717 = vmatprep.subr.mxu0 0.0
    %718 = vmatpush2.msra.mxu0 0.0
    %719 = vmatprep.subr.mxu0 0.0
    %720 = vmatpush2.msra.mxu0 0.0
    %721 = vmatprep.subr.mxu0 0.0
    %722 = vmatpush2.msra.mxu0 0.0
    %723 = vmatprep.subr.mxu0 0.0
    %724 = vmatpush2.msra.mxu0 0.0
    %725 = vmatprep.subr.mxu0 0.0
    %726 = vmatpush2.msra.mxu0 0.0
    %727 = vmatprep.mubr.f32.mxu0 0.0
    %728 = vmatmul.mubr.f32.gmra.mxu0 %v583
    %v729 = vpop.f32.mrf.mxu0
    %v730 = vadd.f32 0.0, %v729
    %v731 = vpop.f32.mrf.mxu0
    %732 = vmatprep.mubr.f32.mxu0 0.0
    %733 = vmatmul.mubr.f32.gmra.mxu0 %v584
    %v734 = vpop.f32.mrf.mxu0
    %v735 = vadd.f32 0.0, %v734
    %v736 = vpop.f32.mrf.mxu0
    %737 = vmatprep.mubr.f32.mxu0 0.0
    %738 = vmatmul.mubr.f32.gmra.mxu0 %v585
    %v739 = vpop.f32.mrf.mxu0
    %v740 = vadd.f32 0.0, %v739
    %v741 = vpop.f32.mrf.mxu0
    %742 = vmatprep.mubr.f32.mxu0 0.0
    %743 = vmatmul.mubr.f32.gmra.mxu0 %v586
    %v744 = vpop.f32.mrf.mxu0
    %v745 = vadd.f32 0.0, %v744
    %v746 = vpop.f32.mrf.mxu0
    %747 = vmatprep.mubr.f32.mxu0 0.0
    %748 = vmatmul.mubr.f32.gmra.mxu0 %v587
    %v749 = vpop.f32.mrf.mxu0
    %v750 = vadd.f32 0.0, %v749
    %v751 = vpop.f32.mrf.mxu0
    %752 = vmatprep.mubr.f32.mxu0 0.0
    %753 = vmatmul.mubr.f32.gmra.mxu0 %v588
    %v754 = vpop.f32.mrf.mxu0
    %v755 = vadd.f32 0.0, %v754
    %v756 = vpop.f32.mrf.mxu0
    %757 = vmatprep.mubr.f32.mxu0 0.0
    %758 = vmatmul.mubr.f32.gmra.mxu0 %v589
    %v759 = vpop.f32.mrf.mxu0
    %v760 = vadd.f32 0.0, %v759
    %v761 = vpop.f32.mrf.mxu0
    %762 = vmatprep.mubr.f32.mxu0 0.0
    %763 = vmatmul.mubr.f32.gmra.mxu0 %v590
    %v764 = vpop.f32.mrf.mxu0
    %v765 = vadd.f32 0.0, %v764
    %v766 = vpop.f32.mrf.mxu0
    %767 = vmatprep.mubr.f32.mxu0 0.0
    %768 = vmatmul.mubr.f32.gmra.mxu0 %v591
    %v769 = vpop.f32.mrf.mxu0
    %v770 = vadd.f32 0.0, %v769
    %v771 = vpop.f32.mrf.mxu0
    %772 = vmatprep.mubr.f32.mxu0 0.0
    %773 = vmatmul.mubr.f32.gmra.mxu0 %v592
    %v774 = vpop.f32.mrf.mxu0
    %v775 = vadd.f32 0.0, %v774
    %v776 = vpop.f32.mrf.mxu0
    %777 = vmatprep.mubr.f32.mxu0 0.0
    %778 = vmatmul.mubr.f32.gmra.mxu0 %v593
    %v779 = vpop.f32.mrf.mxu0
    %v780 = vadd.f32 0.0, %v779
    %v781 = vpop.f32.mrf.mxu0
    %782 = vmatprep.mubr.f32.mxu0 0.0
    %783 = vmatmul.mubr.f32.gmra.mxu0 %v594
    %v784 = vpop.f32.mrf.mxu0
    %v785 = vadd.f32 0.0, %v784
    %v786 = vpop.f32.mrf.mxu0
    %787 = vmatprep.mubr.f32.mxu0 0.0
    %788 = vmatmul.mubr.f32.gmra.mxu0 %v595
    %v789 = vpop.f32.mrf.mxu0
    %v790 = vadd.f32 0.0, %v789
    %v791 = vpop.f32.mrf.mxu0
    %792 = vmatprep.mubr.f32.mxu0 0.0
    %793 = vmatmul.mubr.f32.gmra.mxu0 %v596
    %v794 = vpop.f32.mrf.mxu0
    %v795 = vadd.f32 0.0, %v794
    %v796 = vpop.f32.mrf.mxu0
    %797 = vmatprep.mubr.f32.mxu0 0.0
    %798 = vmatmul.mubr.f32.gmra.mxu0 %v597
    %v799 = vpop.f32.mrf.mxu0
    %v800 = vadd.f32 0.0, %v799
    %v801 = vpop.f32.mrf.mxu0
    %802 = vmatprep.mubr.f32.mxu0 0.0
    %803 = vmatmul.mubr.f32.gmra.mxu0 %v598
    %v804 = vpop.f32.mrf.mxu0
    %v805 = vadd.f32 0.0, %v804
    %v806 = vpop.f32.mrf.mxu0
    %807 = vdwg.mxu0
    %808 = vmatprep.subr.mxu0 0.0
    %809 = vmatpush1.msra.mxu0 %v805
    %810 = vmatprep.subr.mxu0 0.0
    %811 = vmatpush1.msra.mxu0 %v800
    %812 = vmatprep.subr.mxu0 0.0
    %813 = vmatpush1.msra.mxu0 %v795
    %814 = vmatprep.subr.mxu0 0.0
    %815 = vmatpush1.msra.mxu0 %v790
    %816 = vmatprep.subr.mxu0 0.0
    %817 = vmatpush1.msra.mxu0 %v785
    %818 = vmatprep.subr.mxu0 0.0
    %819 = vmatpush1.msra.mxu0 %v780
    %820 = vmatprep.subr.mxu0 0.0
    %821 = vmatpush1.msra.mxu0 %v775
    %822 = vmatprep.subr.mxu0 0.0
    %823 = vmatpush1.msra.mxu0 %v770
    %824 = vmatprep.subr.mxu0 0.0
    %825 = vmatpush1.msra.mxu0 %v765
    %826 = vmatprep.subr.mxu0 0.0
    %827 = vmatpush1.msra.mxu0 %v760
    %828 = vmatprep.subr.mxu0 0.0
    %829 = vmatpush1.msra.mxu0 %v755
    %830 = vmatprep.subr.mxu0 0.0
    %831 = vmatpush1.msra.mxu0 %v750
    %832 = vmatprep.subr.mxu0 0.0
    %833 = vmatpush1.msra.mxu0 %v745
    %834 = vmatprep.subr.mxu0 0.0
    %835 = vmatpush1.msra.mxu0 %v740
    %836 = vmatprep.subr.mxu0 0.0
    %837 = vmatpush1.msra.mxu0 %v735
    %838 = vmatprep.subr.mxu0 0.0
    %839 = vmatpush1.msra.mxu0 %v730
    %840 = vmatprep.subr.mxu0 0.0
    %841 = vmatpush2.msra.mxu0 0.0
    %842 = vmatprep.subr.mxu0 0.0
    %843 = vmatpush2.msra.mxu0 0.0
    %844 = vmatprep.subr.mxu0 0.0
    %845 = vmatpush2.msra.mxu0 0.0
    %846 = vmatprep.subr.mxu0 0.0
    %847 = vmatpush2.msra.mxu0 0.0
    %848 = vmatprep.subr.mxu0 0.0
    %849 = vmatpush2.msra.mxu0 0.0
    %850 = vmatprep.subr.mxu0 0.0
    %851 = vmatpush2.msra.mxu0 0.0
    %852 = vmatprep.subr.mxu0 0.0
    %853 = vmatpush2.msra.mxu0 0.0
    %854 = vmatprep.subr.mxu0 0.0
    %855 = vmatpush2.msra.mxu0 0.0
    %856 = vmatprep.subr.mxu0 0.0
    %857 = vmatpush2.msra.mxu0 0.0
    %858 = vmatprep.subr.mxu0 0.0
    %859 = vmatpush2.msra.mxu0 0.0
    %860 = vmatprep.subr.mxu0 0.0
    %861 = vmatpush2.msra.mxu0 0.0
    %862 = vmatprep.subr.mxu0 0.0
    %863 = vmatpush2.msra.mxu0 0.0
    %864 = vmatprep.subr.mxu0 0.0
    %865 = vmatpush2.msra.mxu0 0.0
    %866 = vmatprep.subr.mxu0 0.0
    %867 = vmatpush2.msra.mxu0 0.0
    %868 = vmatprep.subr.mxu0 0.0
    %869 = vmatpush2.msra.mxu0 0.0
    %870 = vmatprep.subr.mxu0 0.0
    %871 = vmatpush2.msra.mxu0 0.0
    %872 = vmatprep.mubr.f32.mxu0 0.0
    %873 = vmatmul.mubr.f32.gmra.mxu0 %v31
    %v874 = vpop.f32.mrf.mxu0
    %v875 = vadd.f32 0.0, %v874
    %v876 = vpop.f32.mrf.mxu0
    %877 = vmatprep.mubr.f32.mxu0 0.0
    %878 = vmatmul.mubr.f32.gmra.mxu0 %v32
    %v879 = vpop.f32.mrf.mxu0
    %v880 = vadd.f32 0.0, %v879
    %v881 = vpop.f32.mrf.mxu0
    %882 = vmatprep.mubr.f32.mxu0 0.0
    %883 = vmatmul.mubr.f32.gmra.mxu0 %v33
    %v884 = vpop.f32.mrf.mxu0
    %v885 = vadd.f32 0.0, %v884
    %v886 = vpop.f32.mrf.mxu0
    %887 = vmatprep.mubr.f32.mxu0 0.0
    %888 = vmatmul.mubr.f32.gmra.mxu0 %v34
    %v889 = vpop.f32.mrf.mxu0
    %v890 = vadd.f32 0.0, %v889
    %v891 = vpop.f32.mrf.mxu0
    %892 = vmatprep.mubr.f32.mxu0 0.0
    %893 = vmatmul.mubr.f32.gmra.mxu0 %v35
    %v894 = vpop.f32.mrf.mxu0
    %v895 = vadd.f32 0.0, %v894
    %v896 = vpop.f32.mrf.mxu0
    %897 = vmatprep.mubr.f32.mxu0 0.0
    %898 = vmatmul.mubr.f32.gmra.mxu0 %v36
    %v899 = vpop.f32.mrf.mxu0
    %v900 = vadd.f32 0.0, %v899
    %v901 = vpop.f32.mrf.mxu0
    %902 = vmatprep.mubr.f32.mxu0 0.0
    %903 = vmatmul.mubr.f32.gmra.mxu0 %v37
    %v904 = vpop.f32.mrf.mxu0
    %v905 = vadd.f32 0.0, %v904
    %v906 = vpop.f32.mrf.mxu0
    %907 = vmatprep.mubr.f32.mxu0 0.0
    %908 = vmatmul.mubr.f32.gmra.mxu0 %v38
    %v909 = vpop.f32.mrf.mxu0
    %v910 = vadd.f32 0.0, %v909
    %v911 = vpop.f32.mrf.mxu0
    %912 = vmatprep.mubr.f32.mxu0 0.0
    %913 = vmatmul.mubr.f32.gmra.mxu0 %v39
    %v914 = vpop.f32.mrf.mxu0
    %v915 = vadd.f32 0.0, %v914
    %v916 = vpop.f32.mrf.mxu0
    %917 = vmatprep.mubr.f32.mxu0 0.0
    %918 = vmatmul.mubr.f32.gmra.mxu0 %v40
    %v919 = vpop.f32.mrf.mxu0
    %v920 = vadd.f32 0.0, %v919
    %v921 = vpop.f32.mrf.mxu0
    %922 = vmatprep.mubr.f32.mxu0 0.0
    %923 = vmatmul.mubr.f32.gmra.mxu0 %v41
    %v924 = vpop.f32.mrf.mxu0
    %v925 = vadd.f32 0.0, %v924
    %v926 = vpop.f32.mrf.mxu0
    %927 = vmatprep.mubr.f32.mxu0 0.0
    %928 = vmatmul.mubr.f32.gmra.mxu0 %v42
    %v929 = vpop.f32.mrf.mxu0
    %v930 = vadd.f32 0.0, %v929
    %v931 = vpop.f32.mrf.mxu0
    %932 = vmatprep.mubr.f32.mxu0 0.0
    %933 = vmatmul.mubr.f32.gmra.mxu0 %v43
    %v934 = vpop.f32.mrf.mxu0
    %v935 = vadd.f32 0.0, %v934
    %v936 = vpop.f32.mrf.mxu0
    %937 = vmatprep.mubr.f32.mxu0 0.0
    %938 = vmatmul.mubr.f32.gmra.mxu0 %v44
    %v939 = vpop.f32.mrf.mxu0
    %v940 = vadd.f32 0.0, %v939
    %v941 = vpop.f32.mrf.mxu0
    %942 = vmatprep.mubr.f32.mxu0 0.0
    %943 = vmatmul.mubr.f32.gmra.mxu0 %v45
    %v944 = vpop.f32.mrf.mxu0
    %v945 = vadd.f32 0.0, %v944
    %v946 = vpop.f32.mrf.mxu0
    %947 = vmatprep.mubr.f32.mxu0 0.0
    %948 = vmatmul.mubr.f32.gmra.mxu0 %v46
    %v949 = vpop.f32.mrf.mxu0
    %v950 = vadd.f32 0.0, %v949
    %v951 = vpop.f32.mrf.mxu0
    %952 = vdwg.mxu0
    %953 = vst [vmem:[#allocation2] sm:$0xff] %v875
    %954 = vst [vmem:[#allocation2 + $0x8] sm:$0xff] %v880
    %955 = vst [vmem:[#allocation2 + $0x10] sm:$0xff] %v885
    %956 = vst [vmem:[#allocation2 + $0x18] sm:$0xff] %v890
    %957 = vst [vmem:[#allocation2 + $0x20] sm:$0xff] %v895
    %958 = vst [vmem:[#allocation2 + $0x28] sm:$0xff] %v900
    %959 = vst [vmem:[#allocation2 + $0x30] sm:$0xff] %v905
    %960 = vst [vmem:[#allocation2 + $0x38] sm:$0xff] %v910
    %961 = vst [vmem:[#allocation2 + $0x40] sm:$0xff] %v915
    %962 = vst [vmem:[#allocation2 + $0x48] sm:$0xff] %v920
    %963 = vst [vmem:[#allocation2 + $0x50] sm:$0xff] %v925
    %964 = vst [vmem:[#allocation2 + $0x58] sm:$0xff] %v930
    %965 = vst [vmem:[#allocation2 + $0x60] sm:$0xff] %v935
    %966 = vst [vmem:[#allocation2 + $0x68] sm:$0xff] %v940
    %967 = vst [vmem:[#allocation2 + $0x70] sm:$0xff] %v945
    %968 = vst [vmem:[#allocation2 + $0x78] sm:$0xff] %v950
    // Predicated region
    $region14: #{tpu_custom_call.1} parent=1 // pred_check
      _
    $region15: #{tpu_custom_call.1} parent=1 // pred_check_branch
      %970 = sbr.rel (0) target = $region17
    $region16: #{tpu_custom_call.1} parent=1 // pred_region
      %s972 = ssub.s32 2048, 2048
      %973 = vsyncadd [#allocation3], %s972
      %s974 = sshll.u32 [#allocation2], 4
      %s975 = int_to_ptr.vmem [resolvable:$true] %s974
      %980 = dma.vmem_to_hbm [thread:$0]  %s975, 2048, %s3, [#allocation3], 128, 128, 8
    $region17: #{tpu_custom_call.1} parent=1 // pred_fallthru
      _
    // Predicated region
    $region18: #{tpu_custom_call.1} parent=1 // pred_check
      _
    $region19: #{tpu_custom_call.1} parent=1 // pred_check_branch
      %982 = sbr.rel (0) target = $region21
    $region20: #{tpu_custom_call.1} parent=1 // pred_region
      %983 = dma.done [#allocation3], 2048
    $region21: #{tpu_custom_call.1} parent=1 // pred_fallthru
      _
    %984 = vsyncpa [#allocation3], 1

</llo_original>
